<compile_context>
chip_gen: v7x
topology: tpu7x:2x2x1
jax: 0.10.0
libtpu: 0.0.40
codegen_flags: <defaults>
</compile_context>

<pallas_src>
import functools

import jax
import jax.numpy as jnp
from jax.experimental import pallas as pl
from jax.experimental.pallas import tpu as pltpu


_LANE = 128  # lane width; pad C_out to a multiple of this for dense stores


def _conv1x1_kernel(x_ref, w_ref, b_ref, o_ref):
    # x_ref: (rows, C_in) f32, w_ref: (C_in, C_out_pad) bf16,
    # b_ref: (1, C_out_pad) f32, o_ref: (rows, C_out_pad) f32
    x = x_ref[...].astype(w_ref.dtype)  # bf16 MXU input path
    acc = jnp.dot(x, w_ref[...], preferred_element_type=jnp.float32)
    o_ref[...] = (acc + b_ref[...]).astype(o_ref.dtype)


def prepare_conv1x1_params(weight, bias):
    """One-time parameter prep (NOT in the per-call hot path).

    weight: (C_out, C_in, 1, 1)  PyTorch Conv2d layout, f32
    bias:   (C_out,)             f32
    Returns (w_mat, b_mat) with:
      w_mat: (C_in, C_out_pad) bf16  pre-transposed, zero-padded, lane-dense
      b_mat: (1,  C_out_pad)   f32   zero-padded bias row
    """
    c_out, c_in = weight.shape[0], weight.shape[1]
    c_out_pad = ((c_out + _LANE - 1) // _LANE) * _LANE

    w_mat = jnp.transpose(weight.reshape(c_out, c_in), (1, 0))  # (C_in, C_out)
    b_mat = bias.reshape(1, c_out).astype(jnp.float32)
    if c_out_pad != c_out:
        w_mat = jnp.pad(w_mat, ((0, 0), (0, c_out_pad - c_out)))
        b_mat = jnp.pad(b_mat, ((0, 0), (0, c_out_pad - c_out)))
    # bf16 storage: halves the dominant weight DMA; MXU-native on all gens.
    return w_mat.astype(jnp.bfloat16), b_mat


def conv1x1_padded_rows(x_rows, w_mat, b_mat):
    """Hot path: (N, C_in) rows -> (N, C_out_pad) lane-dense padded rows.

    Padding columns are exact zeros, so downstream elementwise consumers can
    keep the padded layout and slice once at the network boundary.
    """
    n_rows, c_in = x_rows.shape
    c_out_pad = w_mat.shape[1]
    c_out_real = 960  # logical C_out (cost model only; padding cols are zero)

    bytes_accessed = (
        x_rows.size * x_rows.dtype.itemsize
        + w_mat.size * w_mat.dtype.itemsize
        + b_mat.size * b_mat.dtype.itemsize
        + n_rows * c_out_pad * 4
    )
    cost = pl.CostEstimate(
        flops=2 * n_rows * c_in * c_out_real,
        transcendentals=0,
        bytes_accessed=bytes_accessed,
    )

    return pl.pallas_call(
        _conv1x1_kernel,
        out_shape=jax.ShapeDtypeStruct((n_rows, c_out_pad), x_rows.dtype),
        in_specs=[
            pl.BlockSpec(memory_space=pltpu.MemorySpace.VMEM),
            pl.BlockSpec(memory_space=pltpu.MemorySpace.VMEM),
            pl.BlockSpec(memory_space=pltpu.MemorySpace.VMEM),
        ],
        out_specs=pl.BlockSpec(memory_space=pltpu.MemorySpace.VMEM),
        cost_estimate=cost,
    )(x_rows, w_mat, b_mat)


@functools.partial(jax.jit, static_argnames=("c_out",))
def conv1x1(x_nchw, w_mat, b_mat, *, c_out):
    """Boundary wrapper: exact Conv2d(40, 960, 1x1) semantics on NCHW input.

    x_nchw: (N, C_in, 1, 1)
    returns (N, C_out, 1, 1)
    """
    N, C_in, H, W = x_nchw.shape
    assert H == 1 and W == 1, "module spec has 1x1 spatial extent"

    # H = W = 1 -> NCHW -> (N, C_in) is a pure reshape (no transpose op).
    x_rows = x_nchw.reshape(N, C_in)
    out_rows = conv1x1_padded_rows(x_rows, w_mat, b_mat)

    # Boundary-only slice of lane padding + reshape back to NCHW.
    # TODO(synk): when a downstream consumer exists, fuse it on the padded
    # (N, 1024) rows and drop this slice from the per-call path entirely.
    return out_rows[:, :c_out].reshape(N, c_out, 1, 1)


if __name__ == "__main__":
    key = jax.random.PRNGKey(0)
    kx, kw, kb = jax.random.split(key, 3)

    # Shapes implied by the module's forward pass.
    x = jax.random.normal(kx, (1, 40, 1, 1), dtype=jnp.float32)
    # Deterministic parameter init (synthetic, not a checkpoint load).
    weight = jax.random.normal(kw, (960, 40, 1, 1), dtype=jnp.float32) * 0.05
    bias = jax.random.normal(kb, (960,), dtype=jnp.float32) * 0.05

    # One-time parameter prep (outside the hot path).
    w_mat, b_mat = prepare_conv1x1_params(weight, bias)

    out = conv1x1(x, w_mat, b_mat, c_out=960)
    jax.block_until_ready(out)

    # Sanity check against plain-JAX reference of the PyTorch Conv2d semantics
    # (f32 weights). bf16 weight storage -> looser, but still tight, tolerance.
    ref = (weight.reshape(960, 40) @ x.reshape(40, 1)).reshape(1, 960, 1, 1) \
        + bias.reshape(1, 960, 1, 1)
    assert out.shape == (1, 960, 1, 1)
    assert jnp.allclose(out, ref, atol=1e-2, rtol=1e-2), \
        float(jnp.max(jnp.abs(out - ref)))

    # Also verify padding columns stay exact zeros (safe for fused consumers).
    padded = conv1x1_padded_rows(x.reshape(1, 40), w_mat, b_mat)
    jax.block_until_ready(padded)
    assert jnp.all(padded[:, 960:] == 0.0)

    print("KERNEL_OK")
</pallas_src>

<mosaic_0001>
module attributes {stable_mosaic.version = 11 : i64} {
  func.func @_conv1x1_kernel(%arg0: memref<1x40xf32, #tpu.memory_space<vmem>>, %arg1: memref<40x1024xbf16, #tpu.memory_space<vmem>>, %arg2: memref<1x1024xf32, #tpu.memory_space<vmem>>, %arg3: memref<1x1024xf32, #tpu.memory_space<vmem>>) attributes {dimension_semantics = [], scalar_prefetch = 0 : i64, scratch_operands = 0 : i64, tpu.core_type = #tpu.core_type<tc>} {
    %c0 = arith.constant 0 : index
    %c0_0 = arith.constant 0 : index
    %0 = vector.load %arg0[%c0, %c0_0] : memref<1x40xf32, #tpu.memory_space<vmem>>, vector<1x40xf32>
    %1 = arith.truncf %0 : vector<1x40xf32> to vector<1x40xbf16>
    %c0_1 = arith.constant 0 : index
    %c0_2 = arith.constant 0 : index
    %2 = vector.load %arg1[%c0_1, %c0_2] : memref<40x1024xbf16, #tpu.memory_space<vmem>>, vector<40x1024xbf16>
    %cst = arith.constant dense<0.000000e+00> : vector<1x1024xf32>
    %3 = tpu.matmul %1, %2, %cst {dimension_numbers = #tpu.dot_dimension_numbers<[1], [0], [0], [1], [0, 0, 1, 1], [], []>} : vector<1x40xbf16>, vector<40x1024xbf16>, vector<1x1024xf32> -> vector<1x1024xf32>
    %c0_3 = arith.constant 0 : index
    %c0_4 = arith.constant 0 : index
    %4 = vector.load %arg2[%c0_3, %c0_4] : memref<1x1024xf32, #tpu.memory_space<vmem>>, vector<1x1024xf32>
    %5 = arith.addf %3, %4 : vector<1x1024xf32>
    %c0_5 = arith.constant 0 : index
    %c0_6 = arith.constant 0 : index
    %6 = vector.load %arg3[%c0_5, %c0_6] : memref<1x1024xf32, #tpu.memory_space<vmem>>, vector<1x1024xf32>
    tpu.vector_store %arg3[%c0_5, %c0_6], %5 {strides = array<i32>} : memref<1x1024xf32, #tpu.memory_space<vmem>>, vector<1x1024xf32>,
    return
  }
}

</mosaic_0001>

<llo_original>
// kernel: conv1x1.1
$region0: #{conv1x1.1}
  #allocation0 [shape = 'u32[]', space=smem, size = 0x4, offset = 0x4, fixed_abs, tag = 'smem constant byte address 0x4 - core index']
  #allocation1 [shape = 'u32[144,128]{1,0:T(1,128)}', space=vmem, size = 0x12000, scoped, tag = 'internal scratch']
  %s0 = inlined_call_operand.vmem [shape: f32[1,40], index: 0, kind: input, shape index: {}]
  %s1 = inlined_call_operand.hbm [shape: bf16[40,1024], index: 1, kind: input, shape index: {}]
  %s2 = inlined_call_operand.vmem [shape: f32[1,1024], index: 2, kind: input, shape index: {}]
  %s3 = inlined_call_operand.vmem [shape: f32[1,1024], index: 3, kind: output, shape index: {}]
  %s4 = sld [smem:[#allocation0]]
  $region26: #{conv1x1.1} parent=0
    _
  %s6 = ssub.s32 1, %s4
  %s7 = scalar_select 0, %s6, %s4
  $region1: #{conv1x1.1} parent=0
    #allocation2 [shape = 'u8[81920]{0}', space=vmem, size = 0x14000, scoped, tag = 'input window, operand 1, single buffered']
    #allocation3 [shape = 's32[1]{0}', space=sflag, size = 0x4, scoped, tag = 'scoped memory for conv1x1.1']
    %8 = vsyncpa [#allocation3], 0
    // Predicated region
    $region2: #{conv1x1.1} parent=1 // pred_check
      _
    $region3: #{conv1x1.1} parent=1 // pred_check_branch
      %10 = sbr.rel (0) target = $region5
    $region4: #{conv1x1.1} parent=1 // pred_region
      _
    $region5: #{conv1x1.1} parent=1 // pred_fallthru
      _
    // Predicated region
    $region6: #{conv1x1.1} parent=1 // pred_check
      _
    $region7: #{conv1x1.1} parent=1 // pred_check_branch
      %12 = sbr.rel (0) target = $region9
    $region8: #{conv1x1.1} parent=1 // pred_region
      %s14 = ssub.s32 2560, 2560
      %15 = vsyncadd [#allocation3], %s14
      %s16 = sshll.u32 [#allocation2], 4
      %s17 = int_to_ptr.vmem [resolvable:$true] %s16
      %22 = dma.hbm_to_vmem [thread:$0]  %s1, 2560, %s17, [#allocation3], 512, 512, 32
    $region9: #{conv1x1.1} parent=1 // pred_fallthru
      _
    // Predicated region
    $region10: #{conv1x1.1} parent=1 // pred_check
      _
    $region11: #{conv1x1.1} parent=1 // pred_check_branch
      %24 = sbr.rel (0) target = $region13
    $region12: #{conv1x1.1} parent=1 // pred_region
      _
    $region13: #{conv1x1.1} parent=1 // pred_fallthru
      _
    // Predicated region
    $region14: #{conv1x1.1} parent=1 // pred_check
      _
    $region15: #{conv1x1.1} parent=1 // pred_check_branch
      %26 = sbr.rel (0) target = $region17
    $region16: #{conv1x1.1} parent=1 // pred_region
      %27 = dma.done [#allocation3], 2560
    $region17: #{conv1x1.1} parent=1 // pred_fallthru
      _
    %v29 = vld [vmem:[%s0] sm:$0x1]
    %v30 = vpack.c.bf16 %v29, %v29
    %v31 = vld [vmem:[#allocation2] sm:$0xff]
    %v32 = vld [vmem:[#allocation2 + $0x8] sm:$0xff]
    %v33 = vld [vmem:[#allocation2 + $0x10] sm:$0xff]
    %v34 = vld [vmem:[#allocation2 + $0x18] sm:$0xff]
    %v35 = vld [vmem:[#allocation2 + $0x20] sm:$0xff]
    %v36 = vld [vmem:[#allocation2 + $0x28] sm:$0xff]
    %v37 = vld [vmem:[#allocation2 + $0x30] sm:$0xff]
    %v38 = vld [vmem:[#allocation2 + $0x38] sm:$0xff]
    %v39 = vld [vmem:[#allocation2 + $0x40] sm:$0xff]
    %v40 = vld [vmem:[#allocation2 + $0x48] sm:$0xff]
    %v41 = vld [vmem:[#allocation2 + $0x50] sm:$0xff]
    %v42 = vld [vmem:[#allocation2 + $0x58] sm:$0xff]
    %v43 = vld [vmem:[#allocation2 + $0x60] sm:$0xff]
    %v44 = vld [vmem:[#allocation2 + $0x68] sm:$0xff]
    %v45 = vld [vmem:[#allocation2 + $0x70] sm:$0xff]
    %v46 = vld [vmem:[#allocation2 + $0x78] sm:$0xff]
    %v47 = vld [vmem:[#allocation2 + $0x80] sm:$0xff]
    %v48 = vld [vmem:[#allocation2 + $0x88] sm:$0xff]
    %v49 = vld [vmem:[#allocation2 + $0x90] sm:$0xff]
    %v50 = vld [vmem:[#allocation2 + $0x98] sm:$0xff]
    %v51 = vld [vmem:[%s2] sm:$0xff]
    %v72 = vunpack.c.l.b16 %v31
    %v73 = vunpack.c.h.b16 %v31
    %v74 = vunpack.c.l.b16 %v32
    %v75 = vunpack.c.h.b16 %v32
    %v76 = vunpack.c.l.b16 %v33
    %v77 = vunpack.c.h.b16 %v33
    %v78 = vunpack.c.l.b16 %v34
    %v79 = vunpack.c.h.b16 %v34
    %v80 = vunpack.c.l.b16 %v35
    %v81 = vunpack.c.h.b16 %v35
    %v82 = vunpack.c.l.b16 %v36
    %v83 = vunpack.c.h.b16 %v36
    %v84 = vunpack.c.l.b16 %v37
    %v85 = vunpack.c.h.b16 %v37
    %v86 = vunpack.c.l.b16 %v38
    %v87 = vunpack.c.h.b16 %v38
    %v88 = vunpack.c.l.b16 %v39
    %v89 = vunpack.c.h.b16 %v39
    %v90 = vunpack.c.l.b16 %v40
    %v91 = vunpack.c.h.b16 %v40
    %v92 = vunpack.c.l.b16 %v41
    %v93 = vunpack.c.h.b16 %v41
    %v94 = vunpack.c.l.b16 %v42
    %v95 = vunpack.c.h.b16 %v42
    %v96 = vunpack.c.l.b16 %v43
    %v97 = vunpack.c.h.b16 %v43
    %v98 = vunpack.c.l.b16 %v44
    %v99 = vunpack.c.h.b16 %v44
    %v100 = vunpack.c.l.b16 %v45
    %v101 = vunpack.c.h.b16 %v45
    %v102 = vunpack.c.l.b16 %v46
    %v103 = vunpack.c.h.b16 %v46
    %v104 = vunpack.c.l.b16 %v47
    %v105 = vunpack.c.h.b16 %v47
    %v106 = vunpack.c.l.b16 %v48
    %v107 = vunpack.c.h.b16 %v48
    %v108 = vunpack.c.l.b16 %v49
    %v109 = vunpack.c.h.b16 %v49
    %v110 = vunpack.c.l.b16 %v50
    %v111 = vunpack.c.h.b16 %v50
    %v112 = vpack.c.b16 %v80, %v72
    %v113 = vpack.c.b16 %v81, %v73
    %v114 = vpack.c.b16 %v82, %v74
    %v115 = vpack.c.b16 %v83, %v75
    %v116 = vpack.c.b16 %v84, %v76
    %v117 = vpack.c.b16 %v85, %v77
    %v118 = vpack.c.b16 %v86, %v78
    %v119 = vpack.c.b16 %v87, %v79
    %v120 = vpack.c.b16 %v96, %v88
    %v121 = vpack.c.b16 %v97, %v89
    %v122 = vpack.c.b16 %v98, %v90
    %v123 = vpack.c.b16 %v99, %v91
    %v124 = vpack.c.b16 %v100, %v92
    %v125 = vpack.c.b16 %v101, %v93
    %v126 = vpack.c.b16 %v102, %v94
    %v127 = vpack.c.b16 %v103, %v95
    %v128 = vpack.c.b16 %v104, %v104
    %v129 = vpack.c.b16 %v105, %v105
    %v130 = vpack.c.b16 %v106, %v106
    %v131 = vpack.c.b16 %v107, %v107
    %v132 = vpack.c.b16 %v108, %v108
    %v133 = vpack.c.b16 %v109, %v109
    %v134 = vpack.c.b16 %v110, %v110
    %v135 = vpack.c.b16 %v111, %v111
    %v153 = vlaneseq
    %v154 = vshrl.u32 %v153, 7
    %v155 = vsub.s32 0, %v154
    %v156 = vrot.slane %v51, %v155
    %v157 = vlaneseq
    %v158 = vshrl.u32 %v157, 7
    %v159 = vsub.s32 1, %v158
    %v160 = vrot.slane %v51, %v159
    %v161 = vlaneseq
    %v162 = vshrl.u32 %v161, 7
    %v163 = vsub.s32 2, %v162
    %v164 = vrot.slane %v51, %v163
    %v165 = vlaneseq
    %v166 = vshrl.u32 %v165, 7
    %v167 = vsub.s32 3, %v166
    %v168 = vrot.slane %v51, %v167
    %v169 = vlaneseq
    %v170 = vshrl.u32 %v169, 7
    %v171 = vsub.s32 4, %v170
    %v172 = vrot.slane %v51, %v171
    %v173 = vlaneseq
    %v174 = vshrl.u32 %v173, 7
    %v175 = vsub.s32 5, %v174
    %v176 = vrot.slane %v51, %v175
    %v177 = vlaneseq
    %v178 = vshrl.u32 %v177, 7
    %v179 = vsub.s32 6, %v178
    %v180 = vrot.slane %v51, %v179
    %v181 = vlaneseq
    %v182 = vshrl.u32 %v181, 7
    %v183 = vsub.s32 7, %v182
    %v184 = vrot.slane %v51, %v183
    %vm193 = vcmask 326656
    %v195 = vsel %vm193, %v30, 0
    %vm197 = vcmask 1043456
    %v199 = vsel %vm197, %v128, 0
    %v202 = vsel %vm197, %v129, 0
    %v205 = vsel %vm197, %v130, 0
    %v208 = vsel %vm197, %v131, 0
    %v211 = vsel %vm197, %v132, 0
    %v214 = vsel %vm197, %v133, 0
    %v217 = vsel %vm197, %v134, 0
    %v220 = vsel %vm197, %v135, 0
    %222 = vmatprep.subr.bf16.mxu0 %v113
    %223 = vmatpush1.bf16.msra.mxu0 %v112
    %224 = vmatprep.subr.bf16.mxu0 %v121
    %225 = vmatpush1.bf16.msra.mxu0 %v120
    %226 = vmatprep.subr.bf16.mxu0 %v202
    %227 = vmatpush1.bf16.msra.mxu0 %v199
    %228 = vmatprep.subr.bf16.mxu0 0
    %229 = vmatpush1.bf16.msra.mxu0 0
    %230 = vmatprep.subr.bf16.mxu0 0
    %231 = vmatpush1.bf16.msra.mxu0 0
    %232 = vmatprep.subr.bf16.mxu0 0
    %233 = vmatpush1.bf16.msra.mxu0 0
    %234 = vmatprep.subr.bf16.mxu0 0
    %235 = vmatpush1.bf16.msra.mxu0 0
    %236 = vmatprep.subr.bf16.mxu0 0
    %237 = vmatpush1.bf16.msra.mxu0 0
    %238 = vmatprep.subr.bf16.mxu0 0
    %239 = vmatpush1.bf16.msra.mxu0 0
    %240 = vmatprep.subr.bf16.mxu0 0
    %241 = vmatpush1.bf16.msra.mxu0 0
    %242 = vmatprep.subr.bf16.mxu0 0
    %243 = vmatpush1.bf16.msra.mxu0 0
    %244 = vmatprep.subr.bf16.mxu0 0
    %245 = vmatpush1.bf16.msra.mxu0 0
    %246 = vmatprep.subr.bf16.mxu0 0
    %247 = vmatpush1.bf16.msra.mxu0 0
    %248 = vmatprep.subr.bf16.mxu0 0
    %249 = vmatpush1.bf16.msra.mxu0 0
    %250 = vmatprep.subr.bf16.mxu0 0
    %251 = vmatpush1.bf16.msra.mxu0 0
    %252 = vmatprep.subr.bf16.mxu0 0
    %253 = vmatpush1.bf16.msra.mxu0 0
    %254 = vmatprep.mubr.bf16.mxu0 0
    %255 = vmatmul.mubr.bf16.gmra.mrb[0].mxu0 %v195
    %v256 = vpop.f32.mrb[0].mxu0
    %v257 = vadd.f32 %v156, %v256
    %v258 = vpop.f32.mrb[0].mxu0
    %v259 = vadd.f32 %v160, %v258
    %v260 = vpop.f32.mrb[0].mxu0
    %v261 = vpop.f32.mrb[0].mxu0
    %262 = vdwg.mxu0
    %263 = vmatprep.subr.bf16.mxu0 %v115
    %264 = vmatpush1.bf16.msra.mxu0 %v114
    %265 = vmatprep.subr.bf16.mxu0 %v123
    %266 = vmatpush1.bf16.msra.mxu0 %v122
    %267 = vmatprep.subr.bf16.mxu0 %v208
    %268 = vmatpush1.bf16.msra.mxu0 %v205
    %269 = vmatprep.subr.bf16.mxu0 0
    %270 = vmatpush1.bf16.msra.mxu0 0
    %271 = vmatprep.subr.bf16.mxu0 0
    %272 = vmatpush1.bf16.msra.mxu0 0
    %273 = vmatprep.subr.bf16.mxu0 0
    %274 = vmatpush1.bf16.msra.mxu0 0
    %275 = vmatprep.subr.bf16.mxu0 0
    %276 = vmatpush1.bf16.msra.mxu0 0
    %277 = vmatprep.subr.bf16.mxu0 0
    %278 = vmatpush1.bf16.msra.mxu0 0
    %279 = vmatprep.subr.bf16.mxu0 0
    %280 = vmatpush1.bf16.msra.mxu0 0
    %281 = vmatprep.subr.bf16.mxu0 0
    %282 = vmatpush1.bf16.msra.mxu0 0
    %283 = vmatprep.subr.bf16.mxu0 0
    %284 = vmatpush1.bf16.msra.mxu0 0
    %285 = vmatprep.subr.bf16.mxu0 0
    %286 = vmatpush1.bf16.msra.mxu0 0
    %287 = vmatprep.subr.bf16.mxu0 0
    %288 = vmatpush1.bf16.msra.mxu0 0
    %289 = vmatprep.subr.bf16.mxu0 0
    %290 = vmatpush1.bf16.msra.mxu0 0
    %291 = vmatprep.subr.bf16.mxu0 0
    %292 = vmatpush1.bf16.msra.mxu0 0
    %293 = vmatprep.subr.bf16.mxu0 0
    %294 = vmatpush1.bf16.msra.mxu0 0
    %295 = vmatprep.mubr.bf16.mxu0 0
    %296 = vmatmul.mubr.bf16.gmra.mrb[0].mxu0 %v195
    %v297 = vpop.f32.mrb[0].mxu0
    %v298 = vadd.f32 %v164, %v297
    %v299 = vpop.f32.mrb[0].mxu0
    %v300 = vadd.f32 %v168, %v299
    %v301 = vpop.f32.mrb[0].mxu0
    %v302 = vpop.f32.mrb[0].mxu0
    %303 = vdwg.mxu0
    %304 = vmatprep.subr.bf16.mxu0 %v117
    %305 = vmatpush1.bf16.msra.mxu0 %v116
    %306 = vmatprep.subr.bf16.mxu0 %v125
    %307 = vmatpush1.bf16.msra.mxu0 %v124
    %308 = vmatprep.subr.bf16.mxu0 %v214
    %309 = vmatpush1.bf16.msra.mxu0 %v211
    %310 = vmatprep.subr.bf16.mxu0 0
    %311 = vmatpush1.bf16.msra.mxu0 0
    %312 = vmatprep.subr.bf16.mxu0 0
    %313 = vmatpush1.bf16.msra.mxu0 0
    %314 = vmatprep.subr.bf16.mxu0 0
    %315 = vmatpush1.bf16.msra.mxu0 0
    %316 = vmatprep.subr.bf16.mxu0 0
    %317 = vmatpush1.bf16.msra.mxu0 0
    %318 = vmatprep.subr.bf16.mxu0 0
    %319 = vmatpush1.bf16.msra.mxu0 0
    %320 = vmatprep.subr.bf16.mxu0 0
    %321 = vmatpush1.bf16.msra.mxu0 0
    %322 = vmatprep.subr.bf16.mxu0 0
    %323 = vmatpush1.bf16.msra.mxu0 0
    %324 = vmatprep.subr.bf16.mxu0 0
    %325 = vmatpush1.bf16.msra.mxu0 0
    %326 = vmatprep.subr.bf16.mxu0 0
    %327 = vmatpush1.bf16.msra.mxu0 0
    %328 = vmatprep.subr.bf16.mxu0 0
    %329 = vmatpush1.bf16.msra.mxu0 0
    %330 = vmatprep.subr.bf16.mxu0 0
    %331 = vmatpush1.bf16.msra.mxu0 0
    %332 = vmatprep.subr.bf16.mxu0 0
    %333 = vmatpush1.bf16.msra.mxu0 0
    %334 = vmatprep.subr.bf16.mxu0 0
    %335 = vmatpush1.bf16.msra.mxu0 0
    %336 = vmatprep.mubr.bf16.mxu0 0
    %337 = vmatmul.mubr.bf16.gmra.mrb[0].mxu0 %v195
    %v338 = vpop.f32.mrb[0].mxu0
    %v339 = vadd.f32 %v172, %v338
    %v340 = vpop.f32.mrb[0].mxu0
    %v341 = vadd.f32 %v176, %v340
    %v342 = vpop.f32.mrb[0].mxu0
    %v343 = vpop.f32.mrb[0].mxu0
    %344 = vdwg.mxu0
    %345 = vmatprep.subr.bf16.mxu0 %v119
    %346 = vmatpush1.bf16.msra.mxu0 %v118
    %347 = vmatprep.subr.bf16.mxu0 %v127
    %348 = vmatpush1.bf16.msra.mxu0 %v126
    %349 = vmatprep.subr.bf16.mxu0 %v220
    %350 = vmatpush1.bf16.msra.mxu0 %v217
    %351 = vmatprep.subr.bf16.mxu0 0
    %352 = vmatpush1.bf16.msra.mxu0 0
    %353 = vmatprep.subr.bf16.mxu0 0
    %354 = vmatpush1.bf16.msra.mxu0 0
    %355 = vmatprep.subr.bf16.mxu0 0
    %356 = vmatpush1.bf16.msra.mxu0 0
    %357 = vmatprep.subr.bf16.mxu0 0
    %358 = vmatpush1.bf16.msra.mxu0 0
    %359 = vmatprep.subr.bf16.mxu0 0
    %360 = vmatpush1.bf16.msra.mxu0 0
    %361 = vmatprep.subr.bf16.mxu0 0
    %362 = vmatpush1.bf16.msra.mxu0 0
    %363 = vmatprep.subr.bf16.mxu0 0
    %364 = vmatpush1.bf16.msra.mxu0 0
    %365 = vmatprep.subr.bf16.mxu0 0
    %366 = vmatpush1.bf16.msra.mxu0 0
    %367 = vmatprep.subr.bf16.mxu0 0
    %368 = vmatpush1.bf16.msra.mxu0 0
    %369 = vmatprep.subr.bf16.mxu0 0
    %370 = vmatpush1.bf16.msra.mxu0 0
    %371 = vmatprep.subr.bf16.mxu0 0
    %372 = vmatpush1.bf16.msra.mxu0 0
    %373 = vmatprep.subr.bf16.mxu0 0
    %374 = vmatpush1.bf16.msra.mxu0 0
    %375 = vmatprep.subr.bf16.mxu0 0
    %376 = vmatpush1.bf16.msra.mxu0 0
    %377 = vmatprep.mubr.bf16.mxu0 0
    %378 = vmatmul.mubr.bf16.gmra.mrb[0].mxu0 %v195
    %v379 = vpop.f32.mrb[0].mxu0
    %v380 = vadd.f32 %v180, %v379
    %v381 = vpop.f32.mrb[0].mxu0
    %v382 = vadd.f32 %v184, %v381
    %v383 = vpop.f32.mrb[0].mxu0
    %v384 = vpop.f32.mrb[0].mxu0
    %385 = vdwg.mxu0
    %v394 = vcombine.low %v257, %v259
    %v395 = vcombine.low %v298, %v300
    %v396 = vcombine.low %v339, %v341
    %v397 = vcombine.low %v380, %v382
    %v399 = vunpack.c.l.s4 1966171168
    %v400 = vunpack.c.0.s8 %v399
    %v401 = vlaneseq
    %v402 = vshrl.u32 %v401, 7
    %v403 = vsub.s32 %v400, %v402
    %v404 = vrot.slane %v394, %v403
    %v406 = vunpack.c.l.s4 1966171168
    %v407 = vunpack.c.0.s8 %v406
    %v408 = vlaneseq
    %v409 = vshrl.u32 %v408, 7
    %v410 = vsub.s32 %v407, %v409
    %v411 = vrot.slane %v395, %v410
    %v413 = vunpack.c.l.s4 1966171168
    %v414 = vunpack.c.0.s8 %v413
    %v415 = vlaneseq
    %v416 = vshrl.u32 %v415, 7
    %v417 = vsub.s32 %v414, %v416
    %v418 = vrot.slane %v396, %v417
    %v420 = vunpack.c.l.s4 1966171168
    %v421 = vunpack.c.0.s8 %v420
    %v422 = vlaneseq
    %v423 = vshrl.u32 %v422, 7
    %v424 = vsub.s32 %v421, %v423
    %v425 = vrot.slane %v397, %v424
    %v426 = vcombine.low %v404, %v411
    %v427 = vcombine.low %v418, %v425
    %v429 = vunpack.c.l.s4 1966171168
    %v430 = vunpack.c.0.s8 %v429
    %v431 = vlaneseq
    %v432 = vshrl.u32 %v431, 7
    %v433 = vsub.s32 %v430, %v432
    %v434 = vrot.slane %v426, %v433
    %v436 = vunpack.c.l.s4 1966171168
    %v437 = vunpack.c.0.s8 %v436
    %v438 = vlaneseq
    %v439 = vshrl.u32 %v438, 7
    %v440 = vsub.s32 %v437, %v439
    %v441 = vrot.slane %v427, %v440
    %v442 = vcombine.low %v434, %v441
    %444 = vst [vmem:[%s3] sm:$0xff] %v442
    // Predicated region
    $region18: #{conv1x1.1} parent=1 // pred_check
      _
    $region19: #{conv1x1.1} parent=1 // pred_check_branch
      %446 = sbr.rel (0) target = $region21
    $region20: #{conv1x1.1} parent=1 // pred_region
      _
    $region21: #{conv1x1.1} parent=1 // pred_fallthru
      _
    // Predicated region
    $region22: #{conv1x1.1} parent=1 // pred_check
      _
    $region23: #{conv1x1.1} parent=1 // pred_check_branch
      %448 = sbr.rel (0) target = $region25
    $region24: #{conv1x1.1} parent=1 // pred_region
      _
    $region25: #{conv1x1.1} parent=1 // pred_fallthru
      _
    %449 = vsyncpa [#allocation3], 1

</llo_original>
